<compile_context>
chip_gen: v7x
topology: tpu7x:2x2x1
jax: 0.10.0
libtpu: 0.0.40
codegen_flags: <defaults>
</compile_context>

<pallas_src>
import functools

import jax
import jax.numpy as jnp
from jax import lax
from jax.experimental import pallas as pl
from jax.experimental.pallas import tpu as pltpu

_SQRT_HALF = 0.7071067811865476
_LN_EPS = 1e-5  # nn.LayerNorm default eps


def _round_up(x, m):
    return ((x + m - 1) // m) * m


def _round_down(x, m):
    return (x // m) * m


def _device_info():
    """Returns (device_kind lowercased, physical per-core VMEM bytes)."""
    try:
        kind = jax.devices()[0].device_kind.lower()
    except Exception:
        kind = ""
    vmem = None
    try:
        vmem = int(pltpu.get_tpu_info().vmem_capacity_bytes)
    except Exception:
        vmem = None
    if vmem is None or vmem <= 0:
        vmem = (64 << 20) if ("v7" in kind or "7x" in kind) else (128 << 20)
    return kind, vmem


def _gen_params(kind, vmem_cap, w_itemsize):
    """Per-generation tuning: usable VMEM budget, streamed-weights row tile,
    MXU alignment for hidden tiles, whether to shard rows across 2 TCs."""
    if "v7" in kind or "7x" in kind:
        usable = min(int(vmem_cap * 0.82), 56 << 20)   # ~52 MiB of the 64 MiB/TC
        base_ai = 340                                   # ~peak_flops / HBM_bw (flop/byte)
        mxu_align = 256
        megacore = True
    elif "v6" in kind:
        usable = min(int(vmem_cap * 0.82), 110 << 20)  # ~105 MiB of 128 MiB
        base_ai = 700
        mxu_align = 256
        megacore = False
    else:  # v5e / v5p / unknown: conservative, still 128 MiB-class budget
        usable = min(int(vmem_cap * 0.82), 100 << 20)
        base_ai = 240
        mxu_align = 128
        megacore = False
    # Weight-streaming roofline: AI on weight bytes ~ 2*tr/itemsize flop/byte.
    stream_rows = _round_up(max(256, (base_ai * w_itemsize + 1) // 2), mxu_align)
    return usable, stream_rows, mxu_align, megacore


def _pick_tile_h(D, H, w_itemsize, weight_budget, align):
    """Largest hidden tile whose (double-buffered) w1/w2 blocks fit weight_budget.
    Always returns H or an `align`-(or 128-)aligned divisor of H (lane-legal)."""
    def resident(th):
        return 4 * D * th * w_itemsize   # (D,th) + (th,D) blocks, 2 buffers each
    if resident(H) <= weight_budget:
        return H
    for a in (align, 128):
        best = None
        for th in range(a, H, a):
            if H % th == 0 and resident(th) <= weight_budget:
                best = th
        if best is not None:
            return best
    return H  # no lane-legal split fits -> keep weights whole, stretch the budget


def _pick_sub_h(tile_h, tr, align, target_bytes=2 << 20):
    """Hidden sub-tile size bounding the (tr, sub_h) f32 fc1/GELU intermediate."""
    if tile_h * tr * 4 <= target_bytes:
        return tile_h
    cap = max(128, target_bytes // (tr * 4))
    for a in (align, 128):
        best = None
        for s in range(a, tile_h, a):
            if tile_h % s == 0 and s <= cap:
                best = s
        if best is not None:
            return best
    return tile_h


# ---------------------------------------------------------------------------
# Kernel bodies
# ---------------------------------------------------------------------------

def _gelu_f32(h, approx):
    if approx:
        # tanh approximation (EUP path) -- slightly different numerics from
        # nn.GELU's exact erf; off by default.
        c0 = jnp.float32(0.7978845608028654)  # sqrt(2/pi)
        return 0.5 * h * (1.0 + jnp.tanh(c0 * (h + 0.044715 * h * h * h)))
    return 0.5 * h * (1.0 + lax.erf(h * jnp.float32(_SQRT_HALF)))


def _layernorm_f32(x, gamma, beta):
    mean = jnp.mean(x, axis=-1, keepdims=True)
    var = jnp.mean(jnp.square(x - mean), axis=-1, keepdims=True)
    ln = (x - mean) * lax.rsqrt(var + jnp.float32(_LN_EPS))
    return ln * gamma + beta


def _mlp_partial(ln_c, w1_blk, b1_blk, w2_blk, approx_gelu):
    # fc1 (f32 accumulate) -> +b1 -> (dropout = identity in eval) -> GELU
    # -> fc2 partial (f32 accumulate). Weights stay in their native dtype.
    h = jnp.dot(ln_c, w1_blk, preferred_element_type=jnp.float32)
    h = h + b1_blk.astype(jnp.float32)
    h = _gelu_f32(h, approx_gelu)
    return jnp.dot(h.astype(w2_blk.dtype), w2_blk,
                   preferred_element_type=jnp.float32)


def _resident_kernel(x_ref, gamma_ref, beta_ref, w1_ref, b1_ref, w2_ref, b2_ref,
                     o_ref, *, n_sub, sub_h, approx_gelu):
    """Weights fully VMEM-resident: 1-D row grid, no scratch, single fused store."""
    x = x_ref[...].astype(jnp.float32)
    ln = _layernorm_f32(x, gamma_ref[...].astype(jnp.float32),
                        beta_ref[...].astype(jnp.float32))
    ln_c = ln.astype(w1_ref.dtype)
    # StaticSkip residual and fc2 bias folded into the accumulator init.
    acc0 = x + b2_ref[...].astype(jnp.float32)

    if n_sub == 1:
        acc = acc0 + _mlp_partial(ln_c, w1_ref[...], b1_ref[...], w2_ref[...],
                                  approx_gelu)
    else:
        def body(l, acc):
            off = pl.multiple_of(l * sub_h, sub_h)
            return acc + _mlp_partial(ln_c,
                                      w1_ref[:, pl.ds(off, sub_h)],
                                      b1_ref[:, pl.ds(off, sub_h)],
                                      w2_ref[pl.ds(off, sub_h), :],
                                      approx_gelu)
        acc = lax.fori_loop(0, n_sub, body, acc0)

    o_ref[...] = acc.astype(o_ref.dtype)


def _streamed_kernel(x_ref, gamma_ref, beta_ref, w1_ref, b1_ref, w2_ref, b2_ref,
                     o_ref, ln_ref, acc_ref, *, n_sub, sub_h, approx_gelu):
    """Weights streamed over the hidden dim (grid = rows x hidden tiles)."""
    j = pl.program_id(1)
    nj = pl.num_programs(1)

    @pl.when(j == 0)
    def _init():
        x = x_ref[...].astype(jnp.float32)
        ln = _layernorm_f32(x, gamma_ref[...].astype(jnp.float32),
                            beta_ref[...].astype(jnp.float32))
        ln_ref[...] = ln.astype(ln_ref.dtype)
        # residual + fc2 bias folded into the accumulator init
        acc_ref[...] = x + b2_ref[...].astype(jnp.float32)

    ln_c = ln_ref[...]
    acc = acc_ref[...]
    if n_sub == 1:
        acc = acc + _mlp_partial(ln_c, w1_ref[...], b1_ref[...], w2_ref[...],
                                 approx_gelu)
    else:
        def body(l, a):
            off = pl.multiple_of(l * sub_h, sub_h)
            return a + _mlp_partial(ln_c,
                                    w1_ref[:, pl.ds(off, sub_h)],
                                    b1_ref[:, pl.ds(off, sub_h)],
                                    w2_ref[pl.ds(off, sub_h), :],
                                    approx_gelu)
        acc = lax.fori_loop(0, n_sub, body, acc)

    # Fused finalize: one store per step, no extra read-modify-write.
    @pl.when(j < nj - 1)
    def _carry():
        acc_ref[...] = acc

    @pl.when(j == nj - 1)
    def _finalize():
        o_ref[...] = acc.astype(o_ref.dtype)


# ---------------------------------------------------------------------------
# Wrapper
# ---------------------------------------------------------------------------

def residual_mlp_block(x, gamma, beta, w1, b1, w2, b2, *,
                       tile_rows=None, tile_h=None, sub_h=None,
                       approx_gelu=False):
    """x: (B, S, D). gamma/beta: (D,)/(1, D). w1: (D, H), b1: (H,)/(1, H),
    w2: (H, D), b2: (D,)/(1, D). Returns fc2(gelu(fc1(LN(x)))) + x, shape (B, S, D)."""
    B, S, D = x.shape
    H = w1.shape[1]
    N = B * S

    gamma = gamma.reshape(1, D)
    beta = beta.reshape(1, D)
    b1 = b1.reshape(1, H)
    b2 = b2.reshape(1, D)

    # TODO(synk): for deployments with D < 128 the output is not lane-dense
    # (masked partial stores); layout-correct here but a wider-D layout would be
    # needed to hit the lane-density lever.

    kind, vmem_cap = _device_info()
    w_it = jnp.dtype(w1.dtype).itemsize
    x_it = jnp.dtype(x.dtype).itemsize
    compute_dtype = w1.dtype              # MXU operand dtype (no f32 weight upcast)
    c_it = jnp.dtype(compute_dtype).itemsize

    usable, stream_rows, mxu_align, megacore = _gen_params(kind, vmem_cap, w_it)

    def clamp_tr(t):
        t = max(16, min(_round_up(int(t), 16), _round_up(N, 16)))
        if megacore and N >= 32:
            # keep >= 2 row tiles so the "parallel" axis shards across both v7x TCs
            t = min(t, _round_up(-(-N // 2), 16))
        return t

    misc = (4 * D + H) * 4 * 2 + (1 << 20)   # gamma/beta/b1/b2 blocks + slack
    interm_target = 2 << 20                  # cap on the (tr, sub_h) f32 intermediate

    # ----- regime: VMEM-resident weights (preferred) vs streamed hidden tiles -----
    tr_res = clamp_tr(tile_rows if tile_rows is not None else 256)
    resident_need = (4 * D * H * w_it          # w1 + w2 fully resident (2 buffers each)
                     + 4 * tr_res * D * x_it   # x + out row tiles (2 buffers each)
                     + interm_target + misc)

    if tile_h is not None:
        assert H % tile_h == 0, "tile_h must divide H"
        th = int(tile_h)
        use_resident = (th == H)
    else:
        use_resident = resident_need <= usable
        th = H if use_resident else None

    if use_resident:
        th = H
        tr = tr_res
    else:
        # streamed weights: row tile from the HBM weight-streaming roofline,
        # capped by an activation-residency budget.
        tr = clamp_tr(tile_rows if tile_rows is not None else stream_rows)
        act_per_row = D * (4 * x_it + c_it + 4)     # x/out (2x buf) + ln + acc scratch
        max_tr = max(16, _round_down(int(0.4 * usable) // max(act_per_row, 1), 16))
        tr = max(16, min(tr, max_tr))
        if th is None:
            weight_budget = max(usable - tr * act_per_row - interm_target - misc,
                                4 * D * 128 * w_it)
            th = _pick_tile_h(D, H, w_it, weight_budget, mxu_align)
            if th == H:                     # full weights fit after all
                use_resident = True
                tr = min(tr_res, tr)

    nh = H // th

    # hidden sub-tiling inside the kernel bounds the f32 fc1/GELU intermediate
    sub = _pick_sub_h(th, tr, mxu_align, interm_target) if sub_h is None else int(sub_h)
    assert th % sub == 0
    n_sub = th // sub

    # ----- pad ragged rows to the row tile -----
    Np = _round_up(N, tr)
    x2d = x.reshape(N, D)
    if Np != N:
        # padded rows run LayerNorm with var=0; the +eps keeps them NaN-free and
        # they are sliced off below.
        x2d = jnp.pad(x2d, ((0, Np - N), (0, 0)))

    # ----- VMEM limit from actual residency, generation-aware cap -----
    if use_resident:
        est = 4 * D * H * w_it + 4 * tr * D * x_it + tr * sub * 4 + misc
    else:
        est = (4 * D * th * w_it + 4 * tr * D * x_it
               + tr * D * (c_it + 4) + tr * sub * 4 + misc)
    vmem_limit = int(min(usable, max(32 << 20, int(est * 1.5) + (4 << 20))))

    if use_resident:
        kernel = functools.partial(_resident_kernel, n_sub=n_sub, sub_h=sub,
                                   approx_gelu=approx_gelu)
        out = pl.pallas_call(
            kernel,
            out_shape=jax.ShapeDtypeStruct((Np, D), x.dtype),
            grid_spec=pltpu.PrefetchScalarGridSpec(
                num_scalar_prefetch=0,
                grid=(Np // tr,),
                in_specs=[
                    pl.BlockSpec((tr, D), lambda i: (i, 0)),   # x rows
                    pl.BlockSpec((1, D), lambda i: (0, 0)),    # gamma
                    pl.BlockSpec((1, D), lambda i: (0, 0)),    # beta
                    pl.BlockSpec((D, H), lambda i: (0, 0)),    # w1 (resident)
                    pl.BlockSpec((1, H), lambda i: (0, 0)),    # b1
                    pl.BlockSpec((H, D), lambda i: (0, 0)),    # w2 (resident)
                    pl.BlockSpec((1, D), lambda i: (0, 0)),    # b2
                ],
                out_specs=pl.BlockSpec((tr, D), lambda i: (i, 0)),
            ),
            compiler_params=pltpu.CompilerParams(
                dimension_semantics=("parallel",),
                vmem_limit_bytes=vmem_limit,
            ),
        )(x2d, gamma, beta, w1, b1, w2, b2)
    else:
        kernel = functools.partial(_streamed_kernel, n_sub=n_sub, sub_h=sub,
                                   approx_gelu=approx_gelu)
        out = pl.pallas_call(
            kernel,
            out_shape=jax.ShapeDtypeStruct((Np, D), x.dtype),
            grid_spec=pltpu.PrefetchScalarGridSpec(
                num_scalar_prefetch=0,
                grid=(Np // tr, nh),
                in_specs=[
                    pl.BlockSpec((tr, D), lambda i, j: (i, 0)),   # x rows
                    pl.BlockSpec((1, D), lambda i, j: (0, 0)),    # gamma
                    pl.BlockSpec((1, D), lambda i, j: (0, 0)),    # beta
                    pl.BlockSpec((D, th), lambda i, j: (0, j)),   # w1 hidden cols
                    pl.BlockSpec((1, th), lambda i, j: (0, j)),   # b1
                    pl.BlockSpec((th, D), lambda i, j: (j, 0)),   # w2 hidden rows
                    pl.BlockSpec((1, D), lambda i, j: (0, 0)),    # b2
                ],
                out_specs=pl.BlockSpec((tr, D), lambda i, j: (i, 0)),
                scratch_shapes=[
                    pltpu.VMEM((tr, D), compute_dtype),   # cached LayerNorm output
                    pltpu.VMEM((tr, D), jnp.float32),     # fc2 accumulator
                ],
            ),
            compiler_params=pltpu.CompilerParams(
                dimension_semantics=("parallel", "arbitrary"),
                vmem_limit_bytes=vmem_limit,
            ),
        )(x2d, gamma, beta, w1, b1, w2, b2)

    if Np != N:
        out = out[:N]
    return out.reshape(B, S, D)


def reference(x, gamma, beta, w1, b1, w2, b2):
    xf = x.astype(jnp.float32)
    mean = jnp.mean(xf, axis=-1, keepdims=True)
    var = jnp.mean(jnp.square(xf - mean), axis=-1, keepdims=True)
    h = (xf - mean) * lax.rsqrt(var + _LN_EPS)
    h = h * gamma.astype(jnp.float32).reshape(1, 1, -1) \
        + beta.astype(jnp.float32).reshape(1, 1, -1)
    h = h @ w1.astype(jnp.float32) + b1.astype(jnp.float32).reshape(1, 1, -1)
    h = 0.5 * h * (1.0 + lax.erf(h * _SQRT_HALF))
    h = h @ w2.astype(jnp.float32) + b2.astype(jnp.float32).reshape(1, 1, -1)
    return h + xf


if __name__ == "__main__":
    # Shapes consistent with the module: batch=2, seq=8, residual_dim=32,
    # hidden_dim=64, dropout=0.1 (eval -> identity), learnable_skip=False.
    # TODO(synk): GateSkip (learnable_skip=True) source not provided; StaticSkip
    # semantics (plain residual add) are implemented.
    B, S, D, H = 2, 8, 32, 64
    key = jax.random.PRNGKey(0)
    kx, k1, k2, k3, k4 = jax.random.split(key, 5)

    x = jax.random.normal(kx, (B, S, D), dtype=jnp.float32)
    gamma = jnp.ones((1, D), jnp.float32)
    beta = jnp.zeros((1, D), jnp.float32)
    w1 = 0.02 * jax.random.normal(k1, (D, H), dtype=jnp.float32)
    b1 = 0.01 * jax.random.normal(k2, (1, H), dtype=jnp.float32)
    w2 = 0.02 * jax.random.normal(k3, (H, D), dtype=jnp.float32)
    b2 = 0.01 * jax.random.normal(k4, (1, D), dtype=jnp.float32)

    # 1) f32, resident-weights path.
    y = jax.block_until_ready(residual_mlp_block(x, gamma, beta, w1, b1, w2, b2))
    y_ref = reference(x, gamma, beta, w1, b1, w2, b2)
    assert jnp.allclose(y, y_ref.astype(y.dtype), atol=1e-3, rtol=1e-3), "f32 mismatch"

    # 2) ragged row count (N = 15 -> padded to the row tile, tail sliced off).
    xr = jax.random.normal(kx, (3, 5, D), dtype=jnp.float32)
    yr = jax.block_until_ready(residual_mlp_block(xr, gamma, beta, w1, b1, w2, b2))
    yr_ref = reference(xr, gamma, beta, w1, b1, w2, b2)
    assert jnp.allclose(yr, yr_ref.astype(yr.dtype), atol=1e-3, rtol=1e-3), "ragged mismatch"

    # 3) bf16 weights/activations -> bf16 MXU operands with f32 accumulation.
    to_bf16 = lambda a: a.astype(jnp.bfloat16)
    yb = jax.block_until_ready(residual_mlp_block(
        to_bf16(x), to_bf16(gamma), to_bf16(beta),
        to_bf16(w1), to_bf16(b1), to_bf16(w2), to_bf16(b2)))
    yb_ref = reference(to_bf16(x), to_bf16(gamma), to_bf16(beta),
                       to_bf16(w1), to_bf16(b1), to_bf16(w2), to_bf16(b2))
    assert jnp.allclose(yb.astype(jnp.float32), yb_ref, atol=1e-1, rtol=1e-1), "bf16 mismatch"

    # 4) exercise the streamed-weights path (nh > 1) and the in-kernel hidden
    #    sub-tile loop (n_sub > 1) at slightly larger, still-small shapes.
    B2, S2, D2, H2 = 2, 64, 256, 1024
    kx2, k5, k6, k7, k8 = jax.random.split(jax.random.PRNGKey(1), 5)
    x2 = jax.random.normal(kx2, (B2, S2, D2), dtype=jnp.float32)
    g2 = 1.0 + 0.1 * jax.random.normal(k5, (1, D2), dtype=jnp.float32)
    be2 = 0.1 * jax.random.normal(k6, (1, D2), dtype=jnp.float32)
    w1b = 0.02 * jax.random.normal(k7, (D2, H2), dtype=jnp.float32)
    b1b = 0.01 * jax.random.normal(k8, (1, H2), dtype=jnp.float32)
    w2b = 0.02 * jax.random.normal(k7, (H2, D2), dtype=jnp.float32)
    b2b = 0.01 * jax.random.normal(k8, (1, D2), dtype=jnp.float32)
    y2 = jax.block_until_ready(residual_mlp_block(
        x2, g2, be2, w1b, b1b, w2b, b2b, tile_rows=64, tile_h=256, sub_h=128))
    y2_ref = reference(x2, g2, be2, w1b, b1b, w2b, b2b)
    assert jnp.allclose(y2, y2_ref, atol=2e-2, rtol=2e-2), "streamed path mismatch"

    print("KERNEL_OK")
</pallas_src>

<mosaic_0001>
module attributes {stable_mosaic.version = 11 : i64} {
  func.func @_resident_kernel(%arg0: i32, %arg1: memref<16x32xf32, #tpu.memory_space<vmem>>, %arg2: memref<1x32xf32, #tpu.memory_space<vmem>>, %arg3: memref<1x32xf32, #tpu.memory_space<vmem>>, %arg4: memref<32x64xf32, #tpu.memory_space<vmem>>, %arg5: memref<1x64xf32, #tpu.memory_space<vmem>>, %arg6: memref<64x32xf32, #tpu.memory_space<vmem>>, %arg7: memref<1x32xf32, #tpu.memory_space<vmem>>, %arg8: memref<16x32xf32, #tpu.memory_space<vmem>>) attributes {dimension_semantics = [#tpu.dimension_semantics<parallel>], iteration_bounds = array<i64: 1>, scalar_prefetch = 0 : i64, scratch_operands = 0 : i64, tpu.core_type = #tpu.core_type<tc>, window_params = [{transform_indices = @transform_0, window_bounds = array<i64: 16, 32>}, {pipeline_mode = #tpu.pipeline_mode<synchronous>, transform_indices = @transform_1, window_bounds = array<i64: 1, 32>}, {pipeline_mode = #tpu.pipeline_mode<synchronous>, transform_indices = @transform_2, window_bounds = array<i64: 1, 32>}, {pipeline_mode = #tpu.pipeline_mode<synchronous>, transform_indices = @transform_3, window_bounds = array<i64: 32, 64>}, {pipeline_mode = #tpu.pipeline_mode<synchronous>, transform_indices = @transform_4, window_bounds = array<i64: 1, 64>}, {pipeline_mode = #tpu.pipeline_mode<synchronous>, transform_indices = @transform_5, window_bounds = array<i64: 64, 32>}, {pipeline_mode = #tpu.pipeline_mode<synchronous>, transform_indices = @transform_6, window_bounds = array<i64: 1, 32>}, {transform_indices = @transform_7, window_bounds = array<i64: 16, 32>}]} {
    %c0 = arith.constant 0 : index
    %c0_0 = arith.constant 0 : index
    %0 = vector.load %arg1[%c0, %c0_0] : memref<16x32xf32, #tpu.memory_space<vmem>>, vector<16x32xf32>
    %c0_1 = arith.constant 0 : index
    %c0_2 = arith.constant 0 : index
    %1 = vector.load %arg2[%c0_1, %c0_2] : memref<1x32xf32, #tpu.memory_space<vmem>>, vector<1x32xf32>
    %c0_3 = arith.constant 0 : index
    %c0_4 = arith.constant 0 : index
    %2 = vector.load %arg3[%c0_3, %c0_4] : memref<1x32xf32, #tpu.memory_space<vmem>>, vector<1x32xf32>
    %cst = arith.constant dense<0.000000e+00> : vector<16xf32>
    %3 = vector.multi_reduction <add>, %0, %cst [1] : vector<16x32xf32> to vector<16xf32>
    %4 = vector.shape_cast %3 : vector<16xf32> to vector<16x1xf32>
    %cst_5 = arith.constant 3.200000e+01 : f32
    %5 = vector.broadcast %cst_5 : f32 to vector<16x1xf32>
    %6 = arith.divf %4, %5 : vector<16x1xf32>
    %7 = vector.broadcast %6 : vector<16x1xf32> to vector<16x32xf32>
    %8 = arith.subf %0, %7 : vector<16x32xf32>
    %9 = arith.mulf %8, %8 : vector<16x32xf32>
    %cst_6 = arith.constant dense<0.000000e+00> : vector<16xf32>
    %10 = vector.multi_reduction <add>, %9, %cst_6 [1] : vector<16x32xf32> to vector<16xf32>
    %11 = vector.shape_cast %10 : vector<16xf32> to vector<16x1xf32>
    %cst_7 = arith.constant 3.200000e+01 : f32
    %12 = vector.broadcast %cst_7 : f32 to vector<16x1xf32>
    %13 = arith.divf %11, %12 : vector<16x1xf32>
    %14 = vector.broadcast %6 : vector<16x1xf32> to vector<16x32xf32>
    %15 = arith.subf %0, %14 : vector<16x32xf32>
    %cst_8 = arith.constant 9.99999974E-6 : f32
    %16 = vector.broadcast %cst_8 : f32 to vector<16x1xf32>
    %17 = arith.addf %13, %16 : vector<16x1xf32>
    %18 = math.rsqrt %17 : vector<16x1xf32>
    %19 = vector.broadcast %18 : vector<16x1xf32> to vector<16x32xf32>
    %20 = arith.mulf %15, %19 : vector<16x32xf32>
    %21 = vector.broadcast %1 : vector<1x32xf32> to vector<16x32xf32>
    %22 = arith.mulf %20, %21 : vector<16x32xf32>
    %23 = vector.broadcast %2 : vector<1x32xf32> to vector<16x32xf32>
    %24 = arith.addf %22, %23 : vector<16x32xf32>
    %c0_9 = arith.constant 0 : index
    %c0_10 = arith.constant 0 : index
    %25 = vector.load %arg7[%c0_9, %c0_10] : memref<1x32xf32, #tpu.memory_space<vmem>>, vector<1x32xf32>
    %26 = vector.broadcast %25 : vector<1x32xf32> to vector<16x32xf32>
    %27 = arith.addf %0, %26 : vector<16x32xf32>
    %c0_11 = arith.constant 0 : index
    %c0_12 = arith.constant 0 : index
    %28 = vector.load %arg4[%c0_11, %c0_12] : memref<32x64xf32, #tpu.memory_space<vmem>>, vector<32x64xf32>
    %c0_13 = arith.constant 0 : index
    %c0_14 = arith.constant 0 : index
    %29 = vector.load %arg5[%c0_13, %c0_14] : memref<1x64xf32, #tpu.memory_space<vmem>>, vector<1x64xf32>
    %c0_15 = arith.constant 0 : index
    %c0_16 = arith.constant 0 : index
    %30 = vector.load %arg6[%c0_15, %c0_16] : memref<64x32xf32, #tpu.memory_space<vmem>>, vector<64x32xf32>
    %cst_17 = arith.constant dense<0.000000e+00> : vector<16x64xf32>
    %31 = tpu.matmul %24, %28, %cst_17 {dimension_numbers = #tpu.dot_dimension_numbers<[1], [0], [0], [1], [0, 0, 1, 1], [], []>} : vector<16x32xf32>, vector<32x64xf32>, vector<16x64xf32> -> vector<16x64xf32>
    %32 = vector.broadcast %29 : vector<1x64xf32> to vector<16x64xf32>
    %33 = arith.addf %31, %32 : vector<16x64xf32>
    %cst_18 = arith.constant 5.000000e-01 : f32
    %34 = vector.broadcast %cst_18 : f32 to vector<16x64xf32>
    %35 = arith.mulf %34, %33 : vector<16x64xf32>
    %cst_19 = arith.constant 0.707106769 : f32
    %36 = vector.broadcast %cst_19 : f32 to vector<16x64xf32>
    %37 = arith.mulf %33, %36 : vector<16x64xf32>
    %38 = math.erf %37 : vector<16x64xf32>
    %cst_20 = arith.constant 1.000000e+00 : f32
    %39 = vector.broadcast %cst_20 : f32 to vector<16x64xf32>
    %40 = arith.addf %39, %38 : vector<16x64xf32>
    %41 = arith.mulf %35, %40 : vector<16x64xf32>
    %cst_21 = arith.constant dense<0.000000e+00> : vector<16x32xf32>
    %42 = tpu.matmul %41, %30, %cst_21 {dimension_numbers = #tpu.dot_dimension_numbers<[1], [0], [0], [1], [0, 0, 1, 1], [], []>} : vector<16x64xf32>, vector<64x32xf32>, vector<16x32xf32> -> vector<16x32xf32>
    %43 = arith.addf %27, %42 : vector<16x32xf32>
    %c0_22 = arith.constant 0 : index
    %c0_23 = arith.constant 0 : index
    %44 = vector.load %arg8[%c0_22, %c0_23] : memref<16x32xf32, #tpu.memory_space<vmem>>, vector<16x32xf32>
    tpu.vector_store %arg8[%c0_22, %c0_23], %43 {strides = array<i32>} : memref<16x32xf32, #tpu.memory_space<vmem>>, vector<16x32xf32>,
    return
  }
  func.func @transform_0(%arg0: i32) -> (i32, i32) {
    %c0_i32 = arith.constant 0 : i32
    %c0_i32_0 = arith.constant 0 : i32
    return %arg0, %c0_i32 : i32, i32
  }
  func.func @transform_1(%arg0: i32) -> (i32, i32) {
    %c0_i32 = arith.constant 0 : i32
    %c0_i32_0 = arith.constant 0 : i32
    %c0_i32_1 = arith.constant 0 : i32
    return %c0_i32, %c0_i32_0 : i32, i32
  }
  func.func @transform_2(%arg0: i32) -> (i32, i32) {
    %c0_i32 = arith.constant 0 : i32
    %c0_i32_0 = arith.constant 0 : i32
    %c0_i32_1 = arith.constant 0 : i32
    return %c0_i32, %c0_i32_0 : i32, i32
  }
  func.func @transform_3(%arg0: i32) -> (i32, i32) {
    %c0_i32 = arith.constant 0 : i32
    %c0_i32_0 = arith.constant 0 : i32
    %c0_i32_1 = arith.constant 0 : i32
    return %c0_i32, %c0_i32_0 : i32, i32
  }
  func.func @transform_4(%arg0: i32) -> (i32, i32) {
    %c0_i32 = arith.constant 0 : i32
    %c0_i32_0 = arith.constant 0 : i32
    %c0_i32_1 = arith.constant 0 : i32
    return %c0_i32, %c0_i32_0 : i32, i32
  }
  func.func @transform_5(%arg0: i32) -> (i32, i32) {
    %c0_i32 = arith.constant 0 : i32
    %c0_i32_0 = arith.constant 0 : i32
    %c0_i32_1 = arith.constant 0 : i32
    return %c0_i32, %c0_i32_0 : i32, i32
  }
  func.func @transform_6(%arg0: i32) -> (i32, i32) {
    %c0_i32 = arith.constant 0 : i32
    %c0_i32_0 = arith.constant 0 : i32
    %c0_i32_1 = arith.constant 0 : i32
    return %c0_i32, %c0_i32_0 : i32, i32
  }
  func.func @transform_7(%arg0: i32) -> (i32, i32) {
    %c0_i32 = arith.constant 0 : i32
    %c0_i32_0 = arith.constant 0 : i32
    return %arg0, %c0_i32 : i32, i32
  }
}

</mosaic_0001>

<llo_original>
// kernel: tpu_custom_call.1
$region0: #{tpu_custom_call.1}
  #allocation0 [shape = 'u32[]', space=smem, size = 0x4, offset = 0x4, fixed_abs, tag = 'smem constant byte address 0x4 - core index']
  #allocation1 [shape = 'u32[144,128]{1,0:T(1,128)}', space=vmem, size = 0x12000, scoped, tag = 'internal scratch']
  %s0 = inlined_call_operand.vmem [shape: f32[16,32], index: 0, kind: input, shape index: {}]
  %s1 = inlined_call_operand.vmem [shape: f32[1,32], index: 1, kind: input, shape index: {}]
  %s2 = inlined_call_operand.vmem [shape: f32[1,32], index: 2, kind: input, shape index: {}]
  %s3 = inlined_call_operand.vmem [shape: f32[32,64], index: 3, kind: input, shape index: {}]
  %s4 = inlined_call_operand.vmem [shape: f32[1,64], index: 4, kind: input, shape index: {}]
  %s5 = inlined_call_operand.vmem [shape: f32[64,32], index: 5, kind: input, shape index: {}]
  %s6 = inlined_call_operand.vmem [shape: f32[1,32], index: 6, kind: input, shape index: {}]
  %s7 = inlined_call_operand.hbm [shape: f32[16,32], index: 7, kind: output, shape index: {}]
  %s8 = sld [smem:[#allocation0]]
  $region38: #{tpu_custom_call.1} parent=0
    _
  %s10 = ssub.s32 1, %s8
  %s11 = scalar_select 0, %s10, %s8
  $region1: #{tpu_custom_call.1} parent=0
    #allocation2 [shape = 'u8[8192]{0}', space=vmem, size = 0x2000, scoped, tag = 'output window, operand 0, single buffered']
    #allocation3 [shape = 's32[1]{0}', space=sflag, size = 0x4, scoped, tag = 'scoped memory for tpu_custom_call.1']
    %12 = vsyncpa [#allocation3], 0
    // Predicated region
    $region2: #{tpu_custom_call.1} parent=1 // pred_check
      _
    $region3: #{tpu_custom_call.1} parent=1 // pred_check_branch
      %14 = sbr.rel (0) target = $region5
    $region4: #{tpu_custom_call.1} parent=1 // pred_region
      _
    $region5: #{tpu_custom_call.1} parent=1 // pred_fallthru
      _
    // Predicated region
    $region6: #{tpu_custom_call.1} parent=1 // pred_check
      _
    $region7: #{tpu_custom_call.1} parent=1 // pred_check_branch
      %16 = sbr.rel (0) target = $region9
    $region8: #{tpu_custom_call.1} parent=1 // pred_region
      _
    $region9: #{tpu_custom_call.1} parent=1 // pred_fallthru
      _
    // Predicated region
    $region10: #{tpu_custom_call.1} parent=1 // pred_check
      _
    $region11: #{tpu_custom_call.1} parent=1 // pred_check_branch
      %18 = sbr.rel (0) target = $region13
    $region12: #{tpu_custom_call.1} parent=1 // pred_region
      _
    $region13: #{tpu_custom_call.1} parent=1 // pred_fallthru
      _
    // Predicated region
    $region14: #{tpu_custom_call.1} parent=1 // pred_check
      _
    $region15: #{tpu_custom_call.1} parent=1 // pred_check_branch
      %20 = sbr.rel (0) target = $region17
    $region16: #{tpu_custom_call.1} parent=1 // pred_region
      _
    $region17: #{tpu_custom_call.1} parent=1 // pred_fallthru
      _
    // Predicated region
    $region18: #{tpu_custom_call.1} parent=1 // pred_check
      _
    $region19: #{tpu_custom_call.1} parent=1 // pred_check_branch
      %22 = sbr.rel (0) target = $region21
    $region20: #{tpu_custom_call.1} parent=1 // pred_region
      _
    $region21: #{tpu_custom_call.1} parent=1 // pred_fallthru
      _
    // Predicated region
    $region22: #{tpu_custom_call.1} parent=1 // pred_check
      _
    $region23: #{tpu_custom_call.1} parent=1 // pred_check_branch
      %24 = sbr.rel (0) target = $region25
    $region24: #{tpu_custom_call.1} parent=1 // pred_region
      _
    $region25: #{tpu_custom_call.1} parent=1 // pred_fallthru
      _
    // Predicated region
    $region26: #{tpu_custom_call.1} parent=1 // pred_check
      _
    $region27: #{tpu_custom_call.1} parent=1 // pred_check_branch
      %26 = sbr.rel (0) target = $region29
    $region28: #{tpu_custom_call.1} parent=1 // pred_region
      _
    $region29: #{tpu_custom_call.1} parent=1 // pred_fallthru
      _
    %v27 = vld [vmem:[%s0] sm:$0xff]
    %v28 = vld [vmem:[%s0 + $0x8] sm:$0xff]
    %v29 = vld [vmem:[%s1] sm:$0x1]
    %v30 = vld [vmem:[%s2] sm:$0x1]
    %vm31 = vcmask 261120
    %v32 = vsel %vm31, %v27, 0.0
    %33 = vadd.xlane.f32.xlu0 %v32
    %v34 = vpop.xlane.xlu0 %33
    %v35 = vsel %vm31, %v28, 0.0
    %36 = vadd.xlane.f32.xlu0 %v35
    %v37 = vpop.xlane.xlu0 %36
    %v38 = vrcp.pop 32.0
    %v39 = vmul.f32 %v34, %v38
    %v40 = vmul.f32 %v37, %v38
    %v41 = vsub.f32 %v27, %v39
    %v42 = vsub.f32 %v28, %v40
    %v43 = vmul.f32 %v41, %v41
    %v44 = vmul.f32 %v42, %v42
    %v45 = vsel %vm31, %v43, 0.0
    %46 = vadd.xlane.f32.xlu0 %v45
    %v47 = vpop.xlane.xlu0 %46
    %v48 = vsel %vm31, %v44, 0.0
    %49 = vadd.xlane.f32.xlu0 %v48
    %v50 = vpop.xlane.xlu0 %49
    %v51 = vmul.f32 %v47, %v38
    %v52 = vmul.f32 %v50, %v38
    %v53 = vadd.f32 %v51, 1e-05
    %v54 = vadd.f32 %v52, 1e-05
    %v55 = vrsqrt.pop %v53
    %v56 = vrsqrt.pop %v54
    %v57 = vmul.f32 %v41, %v55
    %v58 = vmul.f32 %v42, %v56
    %v60 = vlaneseq
    %v61 = vshrl.u32 %v60, 7
    %v62 = vsub.s32 0, %v61
    %v63 = vrot.slane %v29, %v62
    %v65 = vmul.f32 %v57, %v63
    %v66 = vmul.f32 %v58, %v63
    %v68 = vlaneseq
    %v69 = vshrl.u32 %v68, 7
    %v70 = vsub.s32 0, %v69
    %v71 = vrot.slane %v30, %v70
    %v73 = vadd.f32 %v65, %v71
    %v74 = vadd.f32 %v66, %v71
    %v75 = vld [vmem:[%s6] sm:$0x1]
    %v77 = vlaneseq
    %v78 = vshrl.u32 %v77, 7
    %v79 = vsub.s32 0, %v78
    %v80 = vrot.slane %v75, %v79
    %v82 = vadd.f32 %v27, %v80
    %v83 = vadd.f32 %v28, %v80
    %v84 = vld [vmem:[%s3] sm:$0xff]
    %v85 = vld [vmem:[%s3 + $0x8] sm:$0xff]
    %v86 = vld [vmem:[%s3 + $0x10] sm:$0xff]
    %v87 = vld [vmem:[%s3 + $0x18] sm:$0xff]
    %v88 = vld [vmem:[%s4] sm:$0x1]
    %v89 = vld [vmem:[%s5] sm:$0xff]
    %v90 = vld [vmem:[%s5 + $0x8] sm:$0xff]
    %v91 = vld [vmem:[%s5 + $0x10] sm:$0xff]
    %v92 = vld [vmem:[%s5 + $0x18] sm:$0xff]
    %v93 = vld [vmem:[%s5 + $0x20] sm:$0xff]
    %v94 = vld [vmem:[%s5 + $0x28] sm:$0xff]
    %v95 = vld [vmem:[%s5 + $0x30] sm:$0xff]
    %v96 = vld [vmem:[%s5 + $0x38] sm:$0xff]
    %v98 = vlaneseq
    %v99 = vshrl.u32 %v98, 7
    %v100 = vsub.s32 0, %v99
    %v101 = vrot.slane %v88, %v100
    %v104 = vsel %vm31, %v73, 0
    %v107 = vsel %vm31, %v74, 0
    %109 = vmatprep.subr.mxu0 0.0
    %110 = vmatpush1.msra.mxu0 %v84
    %111 = vmatprep.subr.mxu0 0.0
    %112 = vmatpush1.msra.mxu0 %v85
    %113 = vmatprep.subr.mxu0 0.0
    %114 = vmatpush1.msra.mxu0 %v86
    %115 = vmatprep.subr.mxu0 0.0
    %116 = vmatpush1.msra.mxu0 %v87
    %117 = vmatprep.subr.mxu0 0.0
    %118 = vmatpush1.msra.mxu0 0.0
    %119 = vmatprep.subr.mxu0 0.0
    %120 = vmatpush1.msra.mxu0 0.0
    %121 = vmatprep.subr.mxu0 0.0
    %122 = vmatpush1.msra.mxu0 0.0
    %123 = vmatprep.subr.mxu0 0.0
    %124 = vmatpush1.msra.mxu0 0.0
    %125 = vmatprep.subr.mxu0 0.0
    %126 = vmatpush1.msra.mxu0 0.0
    %127 = vmatprep.subr.mxu0 0.0
    %128 = vmatpush1.msra.mxu0 0.0
    %129 = vmatprep.subr.mxu0 0.0
    %130 = vmatpush1.msra.mxu0 0.0
    %131 = vmatprep.subr.mxu0 0.0
    %132 = vmatpush1.msra.mxu0 0.0
    %133 = vmatprep.subr.mxu0 0.0
    %134 = vmatpush1.msra.mxu0 0.0
    %135 = vmatprep.subr.mxu0 0.0
    %136 = vmatpush1.msra.mxu0 0.0
    %137 = vmatprep.subr.mxu0 0.0
    %138 = vmatpush1.msra.mxu0 0.0
    %139 = vmatprep.subr.mxu0 0.0
    %140 = vmatpush1.msra.mxu0 0.0
    %141 = vmatprep.subr.mxu0 0.0
    %142 = vmatpush1.msra.mxu0 0.0
    %143 = vmatprep.subr.mxu0 0.0
    %144 = vmatpush1.msra.mxu0 0.0
    %145 = vmatprep.subr.mxu0 0.0
    %146 = vmatpush1.msra.mxu0 0.0
    %147 = vmatprep.subr.mxu0 0.0
    %148 = vmatpush1.msra.mxu0 0.0
    %149 = vmatprep.subr.mxu0 0.0
    %150 = vmatpush1.msra.mxu0 0.0
    %151 = vmatprep.subr.mxu0 0.0
    %152 = vmatpush1.msra.mxu0 0.0
    %153 = vmatprep.subr.mxu0 0.0
    %154 = vmatpush1.msra.mxu0 0.0
    %155 = vmatprep.subr.mxu0 0.0
    %156 = vmatpush1.msra.mxu0 0.0
    %157 = vmatprep.subr.mxu0 0.0
    %158 = vmatpush1.msra.mxu0 0.0
    %159 = vmatprep.subr.mxu0 0.0
    %160 = vmatpush1.msra.mxu0 0.0
    %161 = vmatprep.subr.mxu0 0.0
    %162 = vmatpush1.msra.mxu0 0.0
    %163 = vmatprep.subr.mxu0 0.0
    %164 = vmatpush1.msra.mxu0 0.0
    %165 = vmatprep.subr.mxu0 0.0
    %166 = vmatpush1.msra.mxu0 0.0
    %167 = vmatprep.subr.mxu0 0.0
    %168 = vmatpush1.msra.mxu0 0.0
    %169 = vmatprep.subr.mxu0 0.0
    %170 = vmatpush1.msra.mxu0 0.0
    %171 = vmatprep.subr.mxu0 0.0
    %172 = vmatpush1.msra.mxu0 0.0
    %173 = vmatprep.mubr.f32.mxu0 0.0
    %174 = vmatmul.mubr.f32.gmra.mrb[0].mxu0 %v104
    %v175 = vpop.f32.mrb[0].mxu0
    %v176 = vadd.f32 %v101, %v175
    %v177 = vpop.f32.mrb[0].mxu0
    %178 = vmatprep.mubr.f32.mxu0 0.0
    %179 = vmatmul.mubr.f32.gmra.mrb[0].mxu0 %v107
    %v180 = vpop.f32.mrb[0].mxu0
    %v181 = vadd.f32 %v101, %v180
    %v182 = vpop.f32.mrb[0].mxu0
    %183 = vdwg.mxu0
    %v184 = vmul.f32 %v176, 0.5
    %v185 = vmul.f32 %v181, 0.5
    %v186 = vmul.f32 %v176, 0.70710677
    %v187 = vmul.f32 %v181, 0.70710677
    %v188 = verf.f32.pop %v186
    %v189 = verf.f32.pop %v187
    %v190 = vadd.f32 %v188, 1.0
    %v191 = vadd.f32 %v189, 1.0
    %v192 = vmul.f32 %v184, %v190
    %v193 = vmul.f32 %v185, %v191
    %vm194 = vcmask 523264
    %v196 = vsel %vm194, %v192, 0
    %v199 = vsel %vm194, %v193, 0
    %201 = vmatprep.subr.mxu0 0.0
    %202 = vmatpush1.msra.mxu0 %v89
    %203 = vmatprep.subr.mxu0 0.0
    %204 = vmatpush1.msra.mxu0 %v90
    %205 = vmatprep.subr.mxu0 0.0
    %206 = vmatpush1.msra.mxu0 %v91
    %207 = vmatprep.subr.mxu0 0.0
    %208 = vmatpush1.msra.mxu0 %v92
    %209 = vmatprep.subr.mxu0 0.0
    %210 = vmatpush1.msra.mxu0 %v93
    %211 = vmatprep.subr.mxu0 0.0
    %212 = vmatpush1.msra.mxu0 %v94
    %213 = vmatprep.subr.mxu0 0.0
    %214 = vmatpush1.msra.mxu0 %v95
    %215 = vmatprep.subr.mxu0 0.0
    %216 = vmatpush1.msra.mxu0 %v96
    %217 = vmatprep.subr.mxu0 0.0
    %218 = vmatpush1.msra.mxu0 0.0
    %219 = vmatprep.subr.mxu0 0.0
    %220 = vmatpush1.msra.mxu0 0.0
    %221 = vmatprep.subr.mxu0 0.0
    %222 = vmatpush1.msra.mxu0 0.0
    %223 = vmatprep.subr.mxu0 0.0
    %224 = vmatpush1.msra.mxu0 0.0
    %225 = vmatprep.subr.mxu0 0.0
    %226 = vmatpush1.msra.mxu0 0.0
    %227 = vmatprep.subr.mxu0 0.0
    %228 = vmatpush1.msra.mxu0 0.0
    %229 = vmatprep.subr.mxu0 0.0
    %230 = vmatpush1.msra.mxu0 0.0
    %231 = vmatprep.subr.mxu0 0.0
    %232 = vmatpush1.msra.mxu0 0.0
    %233 = vmatprep.subr.mxu0 0.0
    %234 = vmatpush1.msra.mxu0 0.0
    %235 = vmatprep.subr.mxu0 0.0
    %236 = vmatpush1.msra.mxu0 0.0
    %237 = vmatprep.subr.mxu0 0.0
    %238 = vmatpush1.msra.mxu0 0.0
    %239 = vmatprep.subr.mxu0 0.0
    %240 = vmatpush1.msra.mxu0 0.0
    %241 = vmatprep.subr.mxu0 0.0
    %242 = vmatpush1.msra.mxu0 0.0
    %243 = vmatprep.subr.mxu0 0.0
    %244 = vmatpush1.msra.mxu0 0.0
    %245 = vmatprep.subr.mxu0 0.0
    %246 = vmatpush1.msra.mxu0 0.0
    %247 = vmatprep.subr.mxu0 0.0
    %248 = vmatpush1.msra.mxu0 0.0
    %249 = vmatprep.subr.mxu0 0.0
    %250 = vmatpush1.msra.mxu0 0.0
    %251 = vmatprep.subr.mxu0 0.0
    %252 = vmatpush1.msra.mxu0 0.0
    %253 = vmatprep.subr.mxu0 0.0
    %254 = vmatpush1.msra.mxu0 0.0
    %255 = vmatprep.subr.mxu0 0.0
    %256 = vmatpush1.msra.mxu0 0.0
    %257 = vmatprep.subr.mxu0 0.0
    %258 = vmatpush1.msra.mxu0 0.0
    %259 = vmatprep.subr.mxu0 0.0
    %260 = vmatpush1.msra.mxu0 0.0
    %261 = vmatprep.subr.mxu0 0.0
    %262 = vmatpush1.msra.mxu0 0.0
    %263 = vmatprep.subr.mxu0 0.0
    %264 = vmatpush1.msra.mxu0 0.0
    %265 = vmatprep.mubr.f32.mxu0 0.0
    %266 = vmatmul.mubr.f32.gmra.mrb[0].mxu0 %v196
    %v267 = vpop.f32.mrb[0].mxu0
    %v268 = vadd.f32 0.0, %v267
    %v269 = vpop.f32.mrb[0].mxu0
    %270 = vmatprep.mubr.f32.mxu0 0.0
    %271 = vmatmul.mubr.f32.gmra.mrb[0].mxu0 %v199
    %v272 = vpop.f32.mrb[0].mxu0
    %v273 = vadd.f32 0.0, %v272
    %v274 = vpop.f32.mrb[0].mxu0
    %275 = vdwg.mxu0
    %v276 = vadd.f32 %v82, %v268
    %v277 = vadd.f32 %v83, %v273
    %278 = vst.msk [vmem:[#allocation2] sm:$0xff] %vm31, %v276
    %279 = vst.msk [vmem:[#allocation2 + $0x8] sm:$0xff] %vm31, %v277
    // Predicated region
    $region30: #{tpu_custom_call.1} parent=1 // pred_check
      _
    $region31: #{tpu_custom_call.1} parent=1 // pred_check_branch
      %281 = sbr.rel (0) target = $region33
    $region32: #{tpu_custom_call.1} parent=1 // pred_region
      %s283 = ssub.s32 256, 256
      %284 = vsyncadd [#allocation3], %s283
      %s285 = sshll.u32 [#allocation2], 4
      %s286 = int_to_ptr.vmem [resolvable:$true] %s285
      %291 = dma.vmem_to_hbm [thread:$0]  %s286, 256, %s7, [#allocation3], 128, 128, 8
    $region33: #{tpu_custom_call.1} parent=1 // pred_fallthru
      _
    // Predicated region
    $region34: #{tpu_custom_call.1} parent=1 // pred_check
      _
    $region35: #{tpu_custom_call.1} parent=1 // pred_check_branch
      %293 = sbr.rel (0) target = $region37
    $region36: #{tpu_custom_call.1} parent=1 // pred_region
      %294 = dma.done [#allocation3], 256
    $region37: #{tpu_custom_call.1} parent=1 // pred_fallthru
      _
    %295 = vsyncpa [#allocation3], 1

</llo_original>
